<compile_context>
chip_gen: v7x
topology: tpu7x:2x2x1
jax: 0.10.0
libtpu: 0.0.40
codegen_flags: <defaults>
</compile_context>

<pallas_src>
import functools

import jax
import jax.numpy as jnp
from jax.experimental import pallas as pl
from jax.experimental.pallas import tpu as pltpu


# ----------------------------- Pallas kernel ------------------------------- #
def _dice_ace_partials_kernel(x_ref, t_ref, o_ref, *, H, W, a_w, b_w, assume_binary):
    x = x_ref[...].astype(jnp.float32)      # (rows, H*W) logits
    t = t_ref[...].astype(jnp.float32)      # (rows, H*W) labels
    p = jax.nn.sigmoid(x)                   # with_logits=True for both sub-losses

    HW = H * W
    col = jax.lax.broadcasted_iota(jnp.int32, p.shape, 1)
    if W & (W - 1) == 0:
        w_idx = jnp.bitwise_and(col, W - 1)
    else:
        w_idx = col % W
    first_w = w_idx == 0
    last_w = w_idx == (W - 1)
    first_h = col < W
    last_h = col >= (H - 1) * W

    def shift(a, k):
        # a[l + k], circular along lanes (wrapped / cross-row lanes are masked by the caller).
        return pltpu.roll(a, (HW - k) % HW, axis=1)

    # H-direction (image rows live W lanes apart), clamp-to-edge at h=0 / h=H-1.
    up_h = jnp.where(first_h, p, shift(p, -W))      # u[h-1, w]
    dn_h = jnp.where(last_h, p, shift(p, W))        # u[h+1, w]
    ci = (dn_h - up_h) * 0.5
    cii = dn_h + up_h - 2.0 * p                     # boundaries reduce to u[1]-u[0] / u[-2]-u[-1]

    # W-direction, clamp-to-edge at w=0 / w=W-1.
    lf_w = jnp.where(first_w, p, shift(p, -1))      # u[h, w-1]
    rt_w = jnp.where(last_w, p, shift(p, 1))        # u[h, w+1]
    cj = (rt_w - lf_w) * 0.5
    cjj = rt_w + lf_w - 2.0 * p

    # Mixed derivative: edge-replicated +-1 lane shift of ci (no /2, matching the module).
    ci_r = jnp.where(last_w, ci, shift(ci, 1))
    ci_l = jnp.where(first_w, ci, shift(ci, -1))
    cij = ci_r - ci_l

    beta = jnp.float32(1e-8)
    ci2 = ci * ci
    cj2 = cj * cj
    g2 = ci2 + cj2
    length = jnp.sqrt(g2 + beta)                    # >= 0, so abs(length) is a no-op
    num = (beta + ci2) * cjj + (beta + cj2) * cii - 2.0 * ci * cj * cij
    denom = g2 * jnp.sqrt(g2) + beta                # exact (ci^2 + cj^2)^1.5 + beta
    r = pl.reciprocal(denom, approx=True)           # EUP approx reciprocal
    r = r * (2.0 - denom * r)                       # one Newton step -> ~f32-exact, no divide
    curv = jnp.abs(num) * r
    elast = (a_w + b_w * curv * curv) * length

    # Per-block partial sums (shared between dice and ACE).
    inter = jnp.sum(p * t)
    sum_p = jnp.sum(p)
    sum_t = jnp.sum(t)
    el_sum = jnp.sum(elast)
    if assume_binary:
        # Region sums are recovered in the wrapper as sum_p - inter / sum_t - inter.
        rin_sum = jnp.float32(0.0)
        rout_sum = jnp.float32(0.0)
    else:
        tm1 = t - 1.0
        rin_sum = jnp.sum(p * tm1 * tm1)
        rout_sum = jnp.sum((1.0 - p) * t * t)

    # Emit partials into a lane-dense, fully (8,128)-aligned output tile.
    lane = jax.lax.broadcasted_iota(jnp.int32, o_ref.shape, 2)
    sub = jax.lax.broadcasted_iota(jnp.int32, o_ref.shape, 1)
    vals = (jnp.where(lane == 0, inter, 0.0)
            + jnp.where(lane == 1, sum_p, 0.0)
            + jnp.where(lane == 2, sum_t, 0.0)
            + jnp.where(lane == 3, el_sum, 0.0)
            + jnp.where(lane == 4, rin_sum, 0.0)
            + jnp.where(lane == 5, rout_sum, 0.0))
    o_ref[...] = jnp.where(sub == 0, vals, 0.0).astype(jnp.float32)


# ------------------------------- Wrapper ------------------------------------ #
def _pick_block_rows(nc, hw):
    """Rows of the (N*C, H*W) layout per grid step: sized so ~16 live f32 full-block
    intermediates stay within ~8 MiB (comfortably inside the 32 MiB scoped-VMEM budget,
    also valid for v7x's 64 MiB physical VMEM), while keeping blocks sublane-aligned."""
    budget_rows = max(1, (8 * 1024 * 1024) // (hw * 4 * 16))
    cands = [d for d in range(1, nc + 1)
             if nc % d == 0 and (d % 8 == 0 or d == nc)]
    fit = [d for d in cands if d <= budget_rows]
    return max(fit) if fit else min(cands)


def dice_ace_loss(inputs, targets, *, w_dice=0.8, w_ace=0.2, smooth=1.0,
                  u_w=1.0, a_w=1.0, b_w=1.0, assume_binary_targets=False):
    """DiceACELoss forward (batch_dice=True, with_logits=True, ACE reduction='mean').

    assume_binary_targets=True reuses the dice reductions for the ACE region term
    (exact only for 0/1 labels); the default keeps the fully general formula.
    """
    N, C, H, W = inputs.shape
    NC, HW = N * C, H * W
    x2 = inputs.reshape(NC, HW)      # free relayout: lane axis becomes H*W (lane-dense)
    t2 = targets.reshape(NC, HW)

    rows = _pick_block_rows(NC, HW)
    grid = (NC // rows,)
    kernel = functools.partial(_dice_ace_partials_kernel, H=H, W=W,
                               a_w=a_w, b_w=b_w, assume_binary=assume_binary_targets)
    parts = pl.pallas_call(
        kernel,
        out_shape=jax.ShapeDtypeStruct((grid[0], 8, 128), jnp.float32),
        grid=grid,
        in_specs=[pl.BlockSpec((rows, HW), lambda g: (g, 0)),
                  pl.BlockSpec((rows, HW), lambda g: (g, 0))],
        out_specs=pl.BlockSpec((1, 8, 128), lambda g: (g, 0, 0)),
        compiler_params=pltpu.CompilerParams(
            dimension_semantics=("parallel",),
            vmem_limit_bytes=32 * 1024 * 1024),
    )(x2, t2)

    # Tiny scalar combine of per-block partials (done in XLA so the grid axis stays parallel).
    sums = jnp.sum(parts[:, 0, :6], axis=0)
    inter, sum_p, sum_t, el_sum = sums[0], sums[1], sums[2], sums[3]
    if assume_binary_targets:
        rin_sum = sum_p - inter          # sum(p * (t - 1)^2) for binary t
        rout_sum = sum_t - inter         # sum((1 - p) * t^2)  for binary t
    else:
        rin_sum, rout_sum = sums[4], sums[5]

    n_elem = jnp.float32(N * C * H * W)
    dice = (2.0 * inter + smooth) / (sum_p + sum_t + smooth)
    dice_loss = 1.0 - dice
    region = u_w * jnp.abs(rin_sum / n_elem) + jnp.abs(rout_sum / n_elem)
    elastica = el_sum / n_elem
    return w_dice * dice_loss + w_ace * (region + elastica)


# --------------------------- Pure-JAX reference ------------------------------ #
def _ref_dice_ace(inputs, targets, w_dice=0.8, w_ace=0.2,
                  smooth=1.0, u_w=1.0, a_w=1.0, b_w=1.0):
    x = inputs.astype(jnp.float32)
    t = targets.astype(jnp.float32)
    p = jax.nn.sigmoid(x)

    inter = jnp.sum(p * t)
    dice = (2.0 * inter + smooth) / (jnp.sum(p) + jnp.sum(t) + smooth)
    dice_loss = 1.0 - dice

    region_in = jnp.abs(jnp.mean(p * (t - 1.0) ** 2))
    region_out = jnp.abs(jnp.mean((1.0 - p) * t ** 2))
    region = u_w * region_in + region_out

    u = p
    ci = jnp.concatenate([u[:, :, 1:2] - u[:, :, 0:1],
                          u[:, :, 2:] - u[:, :, :-2],
                          u[:, :, -1:] - u[:, :, -2:-1]], axis=2) / 2.0
    cj = jnp.concatenate([u[..., 1:2] - u[..., 0:1],
                          u[..., 2:] - u[..., :-2],
                          u[..., -1:] - u[..., -2:-1]], axis=3) / 2.0
    cii = jnp.concatenate([u[:, :, 1:2] - u[:, :, 0:1],
                           u[:, :, 2:] + u[:, :, :-2] - 2 * u[:, :, 1:-1],
                           u[:, :, -2:-1] - u[:, :, -1:]], axis=2)
    cjj = jnp.concatenate([u[..., 1:2] - u[..., 0:1],
                           u[..., 2:] + u[..., :-2] - 2 * u[..., 1:-1],
                           u[..., -2:-1] - u[..., -1:]], axis=3)
    cij = (jnp.concatenate([ci[..., 1:], ci[..., -1:]], axis=3)
           - jnp.concatenate([ci[..., 0:1], ci[..., :-1]], axis=3))
    beta = 1e-8
    g2 = ci ** 2 + cj ** 2
    length = jnp.sqrt(beta + g2)
    curv = (beta + ci ** 2) * cjj + (beta + cj ** 2) * cii - 2 * ci * cj * cij
    curv = jnp.abs(curv) / (g2 * jnp.sqrt(g2) + beta)
    elastica = jnp.mean((a_w + b_w * curv ** 2) * jnp.abs(length))

    return w_dice * dice_loss + w_ace * (region + elastica)


# --------------------------------- Main -------------------------------------- #
if __name__ == "__main__":
    key = jax.random.PRNGKey(0)
    k1, k2 = jax.random.split(key)

    N, C, H, W = 2, 4, 16, 16
    inputs = jax.random.normal(k1, (N, C, H, W), dtype=jnp.float32)             # logits
    targets = (jax.random.uniform(k2, (N, C, H, W)) < 0.5).astype(jnp.float32)  # binary labels

    ref = _ref_dice_ace(inputs, targets)

    # General path (faithful to the module for arbitrary soft labels).
    loss_gen = jax.jit(functools.partial(dice_ace_loss, assume_binary_targets=False))(inputs, targets)
    loss_gen = jax.block_until_ready(loss_gen)
    assert jnp.allclose(loss_gen, ref, rtol=1e-4, atol=1e-5), (loss_gen, ref)

    # Binary-target fast path (region sums reuse the dice reductions).
    loss_bin = jax.jit(functools.partial(dice_ace_loss, assume_binary_targets=True))(inputs, targets)
    loss_bin = jax.block_until_ready(loss_bin)
    assert jnp.allclose(loss_bin, ref, rtol=1e-4, atol=1e-5), (loss_bin, ref)

    print("KERNEL_OK")
</pallas_src>

<mosaic_0001>
module attributes {stable_mosaic.version = 11 : i64} {
  func.func @_dice_ace_partials_kernel(%arg0: i32, %arg1: memref<8x256xf32, #tpu.memory_space<vmem>>, %arg2: memref<8x256xf32, #tpu.memory_space<vmem>>, %arg3: memref<1x8x128xf32, #tpu.memory_space<vmem>>) attributes {dimension_semantics = [#tpu.dimension_semantics<parallel>], iteration_bounds = array<i64: 1>, scalar_prefetch = 0 : i64, scratch_operands = 0 : i64, tpu.core_type = #tpu.core_type<tc>, window_params = [{transform_indices = @transform_0, window_bounds = array<i64: 8, 256>}, {transform_indices = @transform_1, window_bounds = array<i64: 8, 256>}, {transform_indices = @transform_2, window_bounds = array<i64: 1, 8, 128>}]} {
    %c0 = arith.constant 0 : index
    %c0_0 = arith.constant 0 : index
    %0 = vector.load %arg1[%c0, %c0_0] : memref<8x256xf32, #tpu.memory_space<vmem>>, vector<8x256xf32>
    %c0_1 = arith.constant 0 : index
    %c0_2 = arith.constant 0 : index
    %1 = vector.load %arg2[%c0_1, %c0_2] : memref<8x256xf32, #tpu.memory_space<vmem>>, vector<8x256xf32>
    %2 = arith.negf %0 : vector<8x256xf32>
    %3 = math.exp %2 : vector<8x256xf32>
    %cst = arith.constant 1.000000e+00 : f32
    %4 = vector.broadcast %cst : f32 to vector<8x256xf32>
    %5 = arith.addf %4, %3 : vector<8x256xf32>
    %6 = arith.divf %4, %5 : vector<8x256xf32>
    %7 = tpu.iota {dimensions = array<i32: 1>} : vector<8x256xi32>
    %c15_i32 = arith.constant 15 : i32
    %8 = vector.broadcast %c15_i32 : i32 to vector<8x256xi32>
    %9 = arith.andi %7, %8 : vector<8x256xi32>
    %c0_i32 = arith.constant 0 : i32
    %10 = vector.broadcast %c0_i32 : i32 to vector<8x256xi32>
    %11 = arith.cmpi eq, %9, %10 : vector<8x256xi32>
    %c15_i32_3 = arith.constant 15 : i32
    %12 = vector.broadcast %c15_i32_3 : i32 to vector<8x256xi32>
    %13 = arith.cmpi eq, %9, %12 : vector<8x256xi32>
    %c16_i32 = arith.constant 16 : i32
    %14 = vector.broadcast %c16_i32 : i32 to vector<8x256xi32>
    %15 = arith.cmpi slt, %7, %14 : vector<8x256xi32>
    %c240_i32 = arith.constant 240 : i32
    %16 = vector.broadcast %c240_i32 : i32 to vector<8x256xi32>
    %17 = arith.cmpi sge, %7, %16 : vector<8x256xi32>
    %c16_i32_4 = arith.constant 16 : i32
    %18 = tpu.dynamic_rotate %6 by %c16_i32_4 dim 1 : vector<8x256xf32>, i32 -> vector<8x256xf32>
    %19 = arith.select %15, %6, %18 : vector<8x256xi1>, vector<8x256xf32>
    %c240_i32_5 = arith.constant 240 : i32
    %20 = tpu.dynamic_rotate %6 by %c240_i32_5 dim 1 : vector<8x256xf32>, i32 -> vector<8x256xf32>
    %21 = arith.select %17, %6, %20 : vector<8x256xi1>, vector<8x256xf32>
    %22 = arith.subf %21, %19 : vector<8x256xf32>
    %cst_6 = arith.constant 5.000000e-01 : f32
    %23 = vector.broadcast %cst_6 : f32 to vector<8x256xf32>
    %24 = arith.mulf %22, %23 : vector<8x256xf32>
    %25 = arith.addf %21, %19 : vector<8x256xf32>
    %cst_7 = arith.constant 2.000000e+00 : f32
    %26 = vector.broadcast %cst_7 : f32 to vector<8x256xf32>
    %27 = arith.mulf %26, %6 : vector<8x256xf32>
    %28 = arith.subf %25, %27 : vector<8x256xf32>
    %c1_i32 = arith.constant 1 : i32
    %29 = tpu.dynamic_rotate %6 by %c1_i32 dim 1 : vector<8x256xf32>, i32 -> vector<8x256xf32>
    %30 = arith.select %11, %6, %29 : vector<8x256xi1>, vector<8x256xf32>
    %c255_i32 = arith.constant 255 : i32
    %31 = tpu.dynamic_rotate %6 by %c255_i32 dim 1 : vector<8x256xf32>, i32 -> vector<8x256xf32>
    %32 = arith.select %13, %6, %31 : vector<8x256xi1>, vector<8x256xf32>
    %33 = arith.subf %32, %30 : vector<8x256xf32>
    %cst_8 = arith.constant 5.000000e-01 : f32
    %34 = vector.broadcast %cst_8 : f32 to vector<8x256xf32>
    %35 = arith.mulf %33, %34 : vector<8x256xf32>
    %36 = arith.addf %32, %30 : vector<8x256xf32>
    %cst_9 = arith.constant 2.000000e+00 : f32
    %37 = vector.broadcast %cst_9 : f32 to vector<8x256xf32>
    %38 = arith.mulf %37, %6 : vector<8x256xf32>
    %39 = arith.subf %36, %38 : vector<8x256xf32>
    %c255_i32_10 = arith.constant 255 : i32
    %40 = tpu.dynamic_rotate %24 by %c255_i32_10 dim 1 : vector<8x256xf32>, i32 -> vector<8x256xf32>
    %41 = arith.select %13, %24, %40 : vector<8x256xi1>, vector<8x256xf32>
    %c1_i32_11 = arith.constant 1 : i32
    %42 = tpu.dynamic_rotate %24 by %c1_i32_11 dim 1 : vector<8x256xf32>, i32 -> vector<8x256xf32>
    %43 = arith.select %11, %24, %42 : vector<8x256xi1>, vector<8x256xf32>
    %44 = arith.subf %41, %43 : vector<8x256xf32>
    %45 = arith.mulf %24, %24 : vector<8x256xf32>
    %46 = arith.mulf %35, %35 : vector<8x256xf32>
    %47 = arith.addf %45, %46 : vector<8x256xf32>
    %cst_12 = arith.constant 9.99999993E-9 : f32
    %48 = vector.broadcast %cst_12 : f32 to vector<8x256xf32>
    %49 = arith.addf %47, %48 : vector<8x256xf32>
    %50 = math.sqrt %49 : vector<8x256xf32>
    %cst_13 = arith.constant 9.99999993E-9 : f32
    %51 = vector.broadcast %cst_13 : f32 to vector<8x256xf32>
    %52 = arith.addf %51, %45 : vector<8x256xf32>
    %53 = arith.mulf %52, %39 : vector<8x256xf32>
    %cst_14 = arith.constant 9.99999993E-9 : f32
    %54 = vector.broadcast %cst_14 : f32 to vector<8x256xf32>
    %55 = arith.addf %54, %46 : vector<8x256xf32>
    %56 = arith.mulf %55, %28 : vector<8x256xf32>
    %57 = arith.addf %53, %56 : vector<8x256xf32>
    %cst_15 = arith.constant 2.000000e+00 : f32
    %58 = vector.broadcast %cst_15 : f32 to vector<8x256xf32>
    %59 = arith.mulf %58, %24 : vector<8x256xf32>
    %60 = arith.mulf %59, %35 : vector<8x256xf32>
    %61 = arith.mulf %60, %44 : vector<8x256xf32>
    %62 = arith.subf %57, %61 : vector<8x256xf32>
    %63 = math.sqrt %47 : vector<8x256xf32>
    %64 = arith.mulf %47, %63 : vector<8x256xf32>
    %cst_16 = arith.constant 9.99999993E-9 : f32
    %65 = vector.broadcast %cst_16 : f32 to vector<8x256xf32>
    %66 = arith.addf %64, %65 : vector<8x256xf32>
    %67 = tpu.reciprocal %66 {approx = true} : vector<8x256xf32> -> vector<8x256xf32>
    %68 = arith.mulf %66, %67 : vector<8x256xf32>
    %cst_17 = arith.constant 2.000000e+00 : f32
    %69 = vector.broadcast %cst_17 : f32 to vector<8x256xf32>
    %70 = arith.subf %69, %68 : vector<8x256xf32>
    %71 = arith.mulf %67, %70 : vector<8x256xf32>
    %72 = math.absf %62 : vector<8x256xf32>
    %73 = arith.mulf %72, %71 : vector<8x256xf32>
    %cst_18 = arith.constant 1.000000e+00 : f32
    %74 = vector.broadcast %cst_18 : f32 to vector<8x256xf32>
    %75 = arith.mulf %74, %73 : vector<8x256xf32>
    %76 = arith.mulf %75, %73 : vector<8x256xf32>
    %cst_19 = arith.constant 1.000000e+00 : f32
    %77 = vector.broadcast %cst_19 : f32 to vector<8x256xf32>
    %78 = arith.addf %77, %76 : vector<8x256xf32>
    %79 = arith.mulf %78, %50 : vector<8x256xf32>
    %80 = arith.mulf %6, %1 : vector<8x256xf32>
    %81 = vector.shape_cast %80 : vector<8x256xf32> to vector<1x8x256xf32>
    %cst_20 = arith.constant dense<0.000000e+00> : vector<1xf32>
    %82 = vector.multi_reduction <add>, %81, %cst_20 [1, 2] : vector<1x8x256xf32> to vector<1xf32>
    %83 = vector.shape_cast %82 : vector<1xf32> to vector<1x1x1xf32>
    %84 = vector.extract %83[0, 0, 0] : f32 from vector<1x1x1xf32>
    %85 = vector.shape_cast %6 : vector<8x256xf32> to vector<1x8x256xf32>
    %cst_21 = arith.constant dense<0.000000e+00> : vector<1xf32>
    %86 = vector.multi_reduction <add>, %85, %cst_21 [1, 2] : vector<1x8x256xf32> to vector<1xf32>
    %87 = vector.shape_cast %86 : vector<1xf32> to vector<1x1x1xf32>
    %88 = vector.extract %87[0, 0, 0] : f32 from vector<1x1x1xf32>
    %89 = vector.shape_cast %1 : vector<8x256xf32> to vector<1x8x256xf32>
    %cst_22 = arith.constant dense<0.000000e+00> : vector<1xf32>
    %90 = vector.multi_reduction <add>, %89, %cst_22 [1, 2] : vector<1x8x256xf32> to vector<1xf32>
    %91 = vector.shape_cast %90 : vector<1xf32> to vector<1x1x1xf32>
    %92 = vector.extract %91[0, 0, 0] : f32 from vector<1x1x1xf32>
    %93 = vector.shape_cast %79 : vector<8x256xf32> to vector<1x8x256xf32>
    %cst_23 = arith.constant dense<0.000000e+00> : vector<1xf32>
    %94 = vector.multi_reduction <add>, %93, %cst_23 [1, 2] : vector<1x8x256xf32> to vector<1xf32>
    %95 = vector.shape_cast %94 : vector<1xf32> to vector<1x1x1xf32>
    %96 = vector.extract %95[0, 0, 0] : f32 from vector<1x1x1xf32>
    %cst_24 = arith.constant 1.000000e+00 : f32
    %97 = vector.broadcast %cst_24 : f32 to vector<8x256xf32>
    %98 = arith.subf %1, %97 : vector<8x256xf32>
    %99 = arith.mulf %6, %98 : vector<8x256xf32>
    %100 = arith.mulf %99, %98 : vector<8x256xf32>
    %101 = vector.shape_cast %100 : vector<8x256xf32> to vector<1x8x256xf32>
    %cst_25 = arith.constant dense<0.000000e+00> : vector<1xf32>
    %102 = vector.multi_reduction <add>, %101, %cst_25 [1, 2] : vector<1x8x256xf32> to vector<1xf32>
    %103 = vector.shape_cast %102 : vector<1xf32> to vector<1x1x1xf32>
    %104 = vector.extract %103[0, 0, 0] : f32 from vector<1x1x1xf32>
    %cst_26 = arith.constant 1.000000e+00 : f32
    %105 = vector.broadcast %cst_26 : f32 to vector<8x256xf32>
    %106 = arith.subf %105, %6 : vector<8x256xf32>
    %107 = arith.mulf %106, %1 : vector<8x256xf32>
    %108 = arith.mulf %107, %1 : vector<8x256xf32>
    %109 = vector.shape_cast %108 : vector<8x256xf32> to vector<1x8x256xf32>
    %cst_27 = arith.constant dense<0.000000e+00> : vector<1xf32>
    %110 = vector.multi_reduction <add>, %109, %cst_27 [1, 2] : vector<1x8x256xf32> to vector<1xf32>
    %111 = vector.shape_cast %110 : vector<1xf32> to vector<1x1x1xf32>
    %112 = vector.extract %111[0, 0, 0] : f32 from vector<1x1x1xf32>
    %113 = tpu.iota {dimensions = array<i32: 2>} : vector<1x8x128xi32>
    %114 = tpu.iota {dimensions = array<i32: 1>} : vector<1x8x128xi32>
    %c0_i32_28 = arith.constant 0 : i32
    %115 = vector.broadcast %c0_i32_28 : i32 to vector<1x8x128xi32>
    %116 = arith.cmpi eq, %113, %115 : vector<1x8x128xi32>
    %cst_29 = arith.constant 0.000000e+00 : f32
    %117 = vector.broadcast %84 : f32 to vector<1x8x128xf32>
    %118 = vector.broadcast %cst_29 : f32 to vector<1x8x128xf32>
    %119 = arith.select %116, %117, %118 : vector<1x8x128xi1>, vector<1x8x128xf32>
    %c1_i32_30 = arith.constant 1 : i32
    %120 = vector.broadcast %c1_i32_30 : i32 to vector<1x8x128xi32>
    %121 = arith.cmpi eq, %113, %120 : vector<1x8x128xi32>
    %cst_31 = arith.constant 0.000000e+00 : f32
    %122 = vector.broadcast %88 : f32 to vector<1x8x128xf32>
    %123 = vector.broadcast %cst_31 : f32 to vector<1x8x128xf32>
    %124 = arith.select %121, %122, %123 : vector<1x8x128xi1>, vector<1x8x128xf32>
    %125 = arith.addf %119, %124 : vector<1x8x128xf32>
    %c2_i32 = arith.constant 2 : i32
    %126 = vector.broadcast %c2_i32 : i32 to vector<1x8x128xi32>
    %127 = arith.cmpi eq, %113, %126 : vector<1x8x128xi32>
    %cst_32 = arith.constant 0.000000e+00 : f32
    %128 = vector.broadcast %92 : f32 to vector<1x8x128xf32>
    %129 = vector.broadcast %cst_32 : f32 to vector<1x8x128xf32>
    %130 = arith.select %127, %128, %129 : vector<1x8x128xi1>, vector<1x8x128xf32>
    %131 = arith.addf %125, %130 : vector<1x8x128xf32>
    %c3_i32 = arith.constant 3 : i32
    %132 = vector.broadcast %c3_i32 : i32 to vector<1x8x128xi32>
    %133 = arith.cmpi eq, %113, %132 : vector<1x8x128xi32>
    %cst_33 = arith.constant 0.000000e+00 : f32
    %134 = vector.broadcast %96 : f32 to vector<1x8x128xf32>
    %135 = vector.broadcast %cst_33 : f32 to vector<1x8x128xf32>
    %136 = arith.select %133, %134, %135 : vector<1x8x128xi1>, vector<1x8x128xf32>
    %137 = arith.addf %131, %136 : vector<1x8x128xf32>
    %c4_i32 = arith.constant 4 : i32
    %138 = vector.broadcast %c4_i32 : i32 to vector<1x8x128xi32>
    %139 = arith.cmpi eq, %113, %138 : vector<1x8x128xi32>
    %cst_34 = arith.constant 0.000000e+00 : f32
    %140 = vector.broadcast %104 : f32 to vector<1x8x128xf32>
    %141 = vector.broadcast %cst_34 : f32 to vector<1x8x128xf32>
    %142 = arith.select %139, %140, %141 : vector<1x8x128xi1>, vector<1x8x128xf32>
    %143 = arith.addf %137, %142 : vector<1x8x128xf32>
    %c5_i32 = arith.constant 5 : i32
    %144 = vector.broadcast %c5_i32 : i32 to vector<1x8x128xi32>
    %145 = arith.cmpi eq, %113, %144 : vector<1x8x128xi32>
    %cst_35 = arith.constant 0.000000e+00 : f32
    %146 = vector.broadcast %112 : f32 to vector<1x8x128xf32>
    %147 = vector.broadcast %cst_35 : f32 to vector<1x8x128xf32>
    %148 = arith.select %145, %146, %147 : vector<1x8x128xi1>, vector<1x8x128xf32>
    %149 = arith.addf %143, %148 : vector<1x8x128xf32>
    %c0_i32_36 = arith.constant 0 : i32
    %150 = vector.broadcast %c0_i32_36 : i32 to vector<1x8x128xi32>
    %151 = arith.cmpi eq, %114, %150 : vector<1x8x128xi32>
    %cst_37 = arith.constant 0.000000e+00 : f32
    %152 = vector.broadcast %cst_37 : f32 to vector<1x8x128xf32>
    %153 = arith.select %151, %149, %152 : vector<1x8x128xi1>, vector<1x8x128xf32>
    %c0_38 = arith.constant 0 : index
    %c0_39 = arith.constant 0 : index
    %c0_40 = arith.constant 0 : index
    %154 = vector.load %arg3[%c0_38, %c0_39, %c0_40] : memref<1x8x128xf32, #tpu.memory_space<vmem>>, vector<1x8x128xf32>
    tpu.vector_store %arg3[%c0_38, %c0_39, %c0_40], %153 {strides = array<i32>} : memref<1x8x128xf32, #tpu.memory_space<vmem>>, vector<1x8x128xf32>,
    return
  }
  func.func @transform_0(%arg0: i32) -> (i32, i32) {
    %c0_i32 = arith.constant 0 : i32
    %c0_i32_0 = arith.constant 0 : i32
    return %arg0, %c0_i32 : i32, i32
  }
  func.func @transform_1(%arg0: i32) -> (i32, i32) {
    %c0_i32 = arith.constant 0 : i32
    %c0_i32_0 = arith.constant 0 : i32
    return %arg0, %c0_i32 : i32, i32
  }
  func.func @transform_2(%arg0: i32) -> (i32, i32, i32) {
    %c0_i32 = arith.constant 0 : i32
    %c0_i32_0 = arith.constant 0 : i32
    %c0_i32_1 = arith.constant 0 : i32
    return %arg0, %c0_i32, %c0_i32_0 : i32, i32, i32
  }
}

</mosaic_0001>

<llo_original>
// kernel: dice_ace_loss.1
$region0: #{dice_ace_loss.1}
  #allocation0 [shape = 'u32[]', space=smem, size = 0x4, offset = 0x4, fixed_abs, tag = 'smem constant byte address 0x4 - core index']
  #allocation1 [shape = 'u32[144,128]{1,0:T(1,128)}', space=vmem, size = 0x12000, scoped, tag = 'internal scratch']
  %s0 = inlined_call_operand.vmem [shape: f32[8,256], index: 0, kind: input, shape index: {}]
  %s1 = inlined_call_operand.vmem [shape: f32[8,256], index: 1, kind: input, shape index: {}]
  %s2 = inlined_call_operand.vmem [shape: f32[1,8,128], index: 2, kind: output, shape index: {}]
  %s3 = sld [smem:[#allocation0]]
  $region18: #{dice_ace_loss.1} parent=0
    _
  %s5 = ssub.s32 1, %s3
  %s6 = scalar_select 0, %s5, %s3
  // Predicated region
  $region2: #{dice_ace_loss.1} parent=0 // pred_check
    _
  $region3: #{dice_ace_loss.1} parent=0 // pred_check_branch
    %8 = sbr.rel (0) target = $region5
  $region4: #{dice_ace_loss.1} parent=0 // pred_region
    _
  $region5: #{dice_ace_loss.1} parent=0 // pred_fallthru
    _
  // Predicated region
  $region6: #{dice_ace_loss.1} parent=0 // pred_check
    _
  $region7: #{dice_ace_loss.1} parent=0 // pred_check_branch
    %10 = sbr.rel (0) target = $region9
  $region8: #{dice_ace_loss.1} parent=0 // pred_region
    _
  $region9: #{dice_ace_loss.1} parent=0 // pred_fallthru
    _
  %v11 = vld [vmem:[%s0] sm:$0xff]
  %v12 = vld [vmem:[%s0 + $0x8] sm:$0xff]
  %v13 = vld [vmem:[%s1] sm:$0xff]
  %v14 = vld [vmem:[%s1 + $0x8] sm:$0xff]
  %v15 = vxor.u32 %v11, 2147483648
  %v16 = vxor.u32 %v12, 2147483648
  %v17 = vmul.f32 %v15, 1.442695
  %v18 = vpow.pop %v17
  %v19 = vmul.f32 %v16, 1.442695
  %v20 = vpow.pop %v19
  %v21 = vadd.f32 %v18, 1.0
  %v22 = vadd.f32 %v20, 1.0
  %v23 = vrcp.pop %v21
  %v24 = vmul.f32 1.0, %v23
  %v25 = vrcp.pop %v22
  %v26 = vmul.f32 1.0, %v25
  %v27 = vlaneseq
  %v28 = vand.u32 %v27, 127
  %v29 = vadd.s32 %v28, 128
  %v30 = vand.u32 %v28, 15
  %v31 = vand.u32 %v29, 15
  %vm32 = vcmp.eq.s32.totalorder %v30, 0
  %vm33 = vcmp.eq.s32.totalorder %v31, 0
  %vm34 = vcmp.eq.s32.totalorder %v30, 15
  %vm35 = vcmp.eq.s32.totalorder %v31, 15
  %vm36 = vcmp.lt.s32.totalorder %v28, 16
  %vm37 = vcmp.lt.s32.totalorder %v29, 16
  %vm38 = vcmp.ge.s32.totalorder %v28, 240
  %vm39 = vcmp.ge.s32.totalorder %v29, 240
  %40 = vrot.lane.b32.xlu0 %v24, 16
  %v41 = vpop.permute.xlu0 %40
  %42 = vrot.lane.b32.xlu0 %v26, 16
  %v43 = vpop.permute.xlu0 %42
  %v44 = vsel %vm36, %v41, %v43
  %v45 = vsel %vm36, %v43, %v41
  %v46 = vsel %vm36, %v24, %v45
  %v47 = vsel %vm37, %v26, %v44
  %48 = vrot.lane.b32.xlu0 %v24, 112
  %v49 = vpop.permute.xlu0 %48
  %50 = vrot.lane.b32.xlu0 %v26, 112
  %v51 = vpop.permute.xlu0 %50
  %vm52 = vcmp.lt.s32.totalorder %v28, 112
  %v53 = vsel %vm52, %v49, %v51
  %v54 = vsel %vm52, %v51, %v49
  %v55 = vsel %vm38, %v24, %v53
  %v56 = vsel %vm39, %v26, %v54
  %v57 = vsub.f32 %v55, %v46
  %v58 = vsub.f32 %v56, %v47
  %v59 = vmul.f32 %v57, 0.5
  %v60 = vmul.f32 %v58, 0.5
  %v61 = vadd.f32 %v55, %v46
  %v62 = vadd.f32 %v56, %v47
  %v63 = vmul.f32 %v24, 2.0
  %v64 = vmul.f32 %v26, 2.0
  %v65 = vsub.f32 %v61, %v63
  %v66 = vsub.f32 %v62, %v64
  %67 = vrot.lane.b32.xlu0 %v24, 1
  %v68 = vpop.permute.xlu0 %67
  %69 = vrot.lane.b32.xlu0 %v26, 1
  %v70 = vpop.permute.xlu0 %69
  %vm71 = vcmp.lt.s32.totalorder %v28, 1
  %v72 = vsel %vm71, %v68, %v70
  %v73 = vsel %vm71, %v70, %v68
  %v74 = vsel %vm32, %v24, %v73
  %v75 = vsel %vm33, %v26, %v72
  %76 = vrot.lane.b32.xlu0 %v24, 127
  %v77 = vpop.permute.xlu0 %76
  %78 = vrot.lane.b32.xlu0 %v26, 127
  %v79 = vpop.permute.xlu0 %78
  %vm80 = vcmp.lt.s32.totalorder %v28, 127
  %v81 = vsel %vm80, %v77, %v79
  %v82 = vsel %vm80, %v79, %v77
  %v83 = vsel %vm34, %v24, %v81
  %v84 = vsel %vm35, %v26, %v82
  %v85 = vsub.f32 %v83, %v74
  %v86 = vsub.f32 %v84, %v75
  %v87 = vmul.f32 %v85, 0.5
  %v88 = vmul.f32 %v86, 0.5
  %v89 = vadd.f32 %v83, %v74
  %v90 = vadd.f32 %v84, %v75
  %v91 = vsub.f32 %v89, %v63
  %v92 = vsub.f32 %v90, %v64
  %93 = vrot.lane.b32.xlu0 %v59, 127
  %v94 = vpop.permute.xlu0 %93
  %95 = vrot.lane.b32.xlu0 %v60, 127
  %v96 = vpop.permute.xlu0 %95
  %v97 = vsel %vm80, %v94, %v96
  %v98 = vsel %vm80, %v96, %v94
  %v99 = vsel %vm34, %v59, %v97
  %v100 = vsel %vm35, %v60, %v98
  %101 = vrot.lane.b32.xlu0 %v59, 1
  %v102 = vpop.permute.xlu0 %101
  %103 = vrot.lane.b32.xlu0 %v60, 1
  %v104 = vpop.permute.xlu0 %103
  %v105 = vsel %vm71, %v102, %v104
  %v106 = vsel %vm71, %v104, %v102
  %v107 = vsel %vm32, %v59, %v106
  %v108 = vsel %vm33, %v60, %v105
  %v109 = vsub.f32 %v99, %v107
  %v110 = vsub.f32 %v100, %v108
  %v111 = vmul.f32 %v59, %v59
  %v112 = vmul.f32 %v60, %v60
  %v113 = vmul.f32 %v87, %v87
  %v114 = vmul.f32 %v88, %v88
  %v115 = vadd.f32 %v111, %v113
  %v116 = vadd.f32 %v112, %v114
  %v117 = vadd.f32 %v115, 1e-08
  %v118 = vadd.f32 %v116, 1e-08
  %v119 = vrsqrt.pop %v117
  %v120 = vmul.f32 %v117, %v119
  %vm121 = vcmp.eq.f32.partialorder %v117, inf
  %v122 = vsel %vm121, %v117, %v120
  %vm123 = vcmp.eq.f32.partialorder %v117, 0.0
  %v124 = vand.u32 %v117, 2147483648
  %v125 = vsel %vm123, %v124, %v122
  %v126 = vrsqrt.pop %v118
  %v127 = vmul.f32 %v118, %v126
  %vm128 = vcmp.eq.f32.partialorder %v118, inf
  %v129 = vsel %vm128, %v118, %v127
  %vm130 = vcmp.eq.f32.partialorder %v118, 0.0
  %v131 = vand.u32 %v118, 2147483648
  %v132 = vsel %vm130, %v131, %v129
  %v133 = vadd.f32 %v111, 1e-08
  %v134 = vadd.f32 %v112, 1e-08
  %v135 = vmul.f32 %v133, %v91
  %v136 = vmul.f32 %v134, %v92
  %v137 = vadd.f32 %v113, 1e-08
  %v138 = vadd.f32 %v114, 1e-08
  %v139 = vmul.f32 %v137, %v65
  %v140 = vmul.f32 %v138, %v66
  %v141 = vadd.f32 %v135, %v139
  %v142 = vadd.f32 %v136, %v140
  %v143 = vmul.f32 %v59, 2.0
  %v144 = vmul.f32 %v60, 2.0
  %v145 = vmul.f32 %v143, %v87
  %v146 = vmul.f32 %v144, %v88
  %v147 = vmul.f32 %v145, %v109
  %v148 = vmul.f32 %v146, %v110
  %v149 = vsub.f32 %v141, %v147
  %v150 = vsub.f32 %v142, %v148
  %v151 = vrsqrt.pop %v115
  %v152 = vmul.f32 %v115, %v151
  %vm153 = vcmp.eq.f32.partialorder %v115, inf
  %v154 = vsel %vm153, %v115, %v152
  %vm155 = vcmp.eq.f32.partialorder %v115, 0.0
  %v156 = vand.u32 %v115, 2147483648
  %v157 = vsel %vm155, %v156, %v154
  %v158 = vrsqrt.pop %v116
  %v159 = vmul.f32 %v116, %v158
  %vm160 = vcmp.eq.f32.partialorder %v116, inf
  %v161 = vsel %vm160, %v116, %v159
  %vm162 = vcmp.eq.f32.partialorder %v116, 0.0
  %v163 = vand.u32 %v116, 2147483648
  %v164 = vsel %vm162, %v163, %v161
  %v165 = vmul.f32 %v115, %v157
  %v166 = vmul.f32 %v116, %v164
  %v167 = vadd.f32 %v165, 1e-08
  %v168 = vadd.f32 %v166, 1e-08
  %v169 = vrcp.pop %v167
  %v170 = vrcp.pop %v168
  %v171 = vmul.f32 %v167, %v169
  %v172 = vmul.f32 %v168, %v170
  %v173 = vsub.f32 2.0, %v171
  %v174 = vsub.f32 2.0, %v172
  %v175 = vmul.f32 %v169, %v173
  %v176 = vmul.f32 %v170, %v174
  %v177 = vand.u32 2147483647, %v149
  %v178 = vand.u32 2147483647, %v150
  %v179 = vmul.f32 %v177, %v175
  %v180 = vmul.f32 %v178, %v176
  %v181 = vmul.f32 %v179, %v179
  %v182 = vmul.f32 %v180, %v180
  %v183 = vadd.f32 %v181, 1.0
  %v184 = vadd.f32 %v182, 1.0
  %v185 = vmul.f32 %v183, %v125
  %v186 = vmul.f32 %v184, %v132
  %v187 = vmul.f32 %v24, %v13
  %v188 = vmul.f32 %v26, %v14
  %v189 = vadd.f32 %v187, %v188
  %190 = vadd.xlane.f32.xlu0 %v189
  %v191 = vpop.xlane.xlu0 %190
  %v192 = vrot.slane %v191, 4
  %v193 = vadd.f32 %v191, %v192
  %v194 = vrot.slane %v193, 2
  %v195 = vadd.f32 %v193, %v194
  %v196 = vrot.slane %v195, 1
  %v197 = vadd.f32 %v195, %v196
  %s198 = vtos %v197
  %v199 = vadd.f32 %v24, %v26
  %200 = vadd.xlane.f32.xlu0 %v199
  %v201 = vpop.xlane.xlu0 %200
  %v202 = vrot.slane %v201, 4
  %v203 = vadd.f32 %v201, %v202
  %v204 = vrot.slane %v203, 2
  %v205 = vadd.f32 %v203, %v204
  %v206 = vrot.slane %v205, 1
  %v207 = vadd.f32 %v205, %v206
  %s208 = vtos %v207
  %v209 = vadd.f32 %v13, %v14
  %210 = vadd.xlane.f32.xlu0 %v209
  %v211 = vpop.xlane.xlu0 %210
  %v212 = vrot.slane %v211, 4
  %v213 = vadd.f32 %v211, %v212
  %v214 = vrot.slane %v213, 2
  %v215 = vadd.f32 %v213, %v214
  %v216 = vrot.slane %v215, 1
  %v217 = vadd.f32 %v215, %v216
  %s218 = vtos %v217
  %v219 = vadd.f32 %v185, %v186
  %220 = vadd.xlane.f32.xlu0 %v219
  %v221 = vpop.xlane.xlu0 %220
  %v222 = vrot.slane %v221, 4
  %v223 = vadd.f32 %v221, %v222
  %v224 = vrot.slane %v223, 2
  %v225 = vadd.f32 %v223, %v224
  %v226 = vrot.slane %v225, 1
  %v227 = vadd.f32 %v225, %v226
  %s228 = vtos %v227
  %v229 = vsub.f32 %v13, 1.0
  %v230 = vsub.f32 %v14, 1.0
  %v231 = vmul.f32 %v24, %v229
  %v232 = vmul.f32 %v26, %v230
  %v233 = vmul.f32 %v231, %v229
  %v234 = vmul.f32 %v232, %v230
  %v235 = vadd.f32 %v233, %v234
  %236 = vadd.xlane.f32.xlu0 %v235
  %v237 = vpop.xlane.xlu0 %236
  %v238 = vrot.slane %v237, 4
  %v239 = vadd.f32 %v237, %v238
  %v240 = vrot.slane %v239, 2
  %v241 = vadd.f32 %v239, %v240
  %v242 = vrot.slane %v241, 1
  %v243 = vadd.f32 %v241, %v242
  %s244 = vtos %v243
  %v245 = vsub.f32 1.0, %v24
  %v246 = vsub.f32 1.0, %v26
  %v247 = vmul.f32 %v245, %v13
  %v248 = vmul.f32 %v246, %v14
  %v249 = vmul.f32 %v247, %v13
  %v250 = vmul.f32 %v248, %v14
  %v251 = vadd.f32 %v249, %v250
  %252 = vadd.xlane.f32.xlu0 %v251
  %v253 = vpop.xlane.xlu0 %252
  %v254 = vrot.slane %v253, 4
  %v255 = vadd.f32 %v253, %v254
  %v256 = vrot.slane %v255, 2
  %v257 = vadd.f32 %v255, %v256
  %v258 = vrot.slane %v257, 1
  %v259 = vadd.f32 %v257, %v258
  %s260 = vtos %v259
  %v261 = vlaneseq
  %v262 = vshrl.u32 %v261, 7
  %vm263 = vcmp.eq.s32.totalorder %v28, 0
  %v264 = vstv %s198
  %v265 = vsel %vm263, %v264, 0.0
  %vm266 = vcmp.eq.s32.totalorder %v28, 1
  %v267 = vstv %s208
  %v268 = vsel %vm266, %v267, 0.0
  %v269 = vadd.f32 %v265, %v268
  %vm270 = vcmp.eq.s32.totalorder %v28, 2
  %v271 = vstv %s218
  %v272 = vsel %vm270, %v271, 0.0
  %v273 = vadd.f32 %v269, %v272
  %vm274 = vcmp.eq.s32.totalorder %v28, 3
  %v275 = vstv %s228
  %v276 = vsel %vm274, %v275, 0.0
  %v277 = vadd.f32 %v273, %v276
  %vm278 = vcmp.eq.s32.totalorder %v28, 4
  %v279 = vstv %s244
  %v280 = vsel %vm278, %v279, 0.0
  %v281 = vadd.f32 %v277, %v280
  %vm282 = vcmp.eq.s32.totalorder %v28, 5
  %v283 = vstv %s260
  %v284 = vsel %vm282, %v283, 0.0
  %v285 = vadd.f32 %v281, %v284
  %vm286 = vcmp.eq.s32.totalorder %v262, 0
  %v287 = vsel %vm286, %v285, 0.0
  %288 = vst [vmem:[%s2] sm:$0xff] %v287
  // Predicated region
  $region10: #{dice_ace_loss.1} parent=0 // pred_check
    _
  $region11: #{dice_ace_loss.1} parent=0 // pred_check_branch
    %290 = sbr.rel (0) target = $region13
  $region12: #{dice_ace_loss.1} parent=0 // pred_region
    _
  $region13: #{dice_ace_loss.1} parent=0 // pred_fallthru
    _
  // Predicated region
  $region14: #{dice_ace_loss.1} parent=0 // pred_check
    _
  $region15: #{dice_ace_loss.1} parent=0 // pred_check_branch
    %292 = sbr.rel (0) target = $region17
  $region16: #{dice_ace_loss.1} parent=0 // pred_region
    _
  $region17: #{dice_ace_loss.1} parent=0 // pred_fallthru
    _

</llo_original>
